<compile_context>
chip_gen: v5e
topology: v5e:2x2
jax: 0.10.0
libtpu: 0.0.40
codegen_flags: <defaults>
</compile_context>

<pallas_src>
import numpy as np
import jax
import jax.numpy as jnp
from jax.experimental import pallas as pl
from jax.experimental.pallas import tpu as pltpu


def _sage_fused_kernel(a_ref, x_ref, w_ref, b_ref, o_ref):
    """Fused multi-layer SAGE forward for one subgraph (one grid step).

    a_ref : [N, N]      f32  binary adjacency; a[i, j] = 1  <=>  j is an in-neighbor of i
    x_ref : [N, F]      f32  node features (feature dim pre-padded to the slab width F)
    w_ref : [2L, F, F]  bf16 weight slab; w_ref[2*l] = W_l of layer l, w_ref[2*l+1] = W_r
    b_ref : [L, 1, F]   f32  bias slab (lin_l bias; lin_r has no bias in PyG SAGEConv)
    o_ref : [N, C]      f32  log-softmax output (C = out_channels)
    """
    num_layers = w_ref.shape[0] // 2
    n_classes = o_ref.shape[-1]

    a_raw = a_ref[...]                                      # f32 [N, N]
    a = a_raw.astype(jnp.bfloat16)                          # exact for 0/1 entries
    deg = jnp.sum(a_raw, axis=-1, keepdims=True)            # f32 [N, 1]
    inv_deg = 1.0 / jnp.maximum(deg, 1.0)                   # mean-aggregation row scale

    x = x_ref[...].astype(jnp.bfloat16)                     # [N, F]

    for li in range(num_layers):                            # unrolled; shapes static per layer
        w_l = w_ref[2 * li]                                 # [F, F] bf16
        w_r = w_ref[2 * li + 1]                             # [F, F] bf16
        b = b_ref[li]                                       # [1, F] f32

        # mean neighbor aggregation: h = D^-1 (A @ x)       (MXU, f32 accumulate)
        h = jnp.dot(a, x, preferred_element_type=jnp.float32) * inv_deg
        # SAGEConv: out = h @ W_l + x @ W_r + b  (two lane-dense dots, no column splits)
        out = (jnp.dot(h.astype(jnp.bfloat16), w_l, preferred_element_type=jnp.float32)
               + jnp.dot(x, w_r, preferred_element_type=jnp.float32)
               + b)

        if li < num_layers - 1:
            out = jnp.maximum(out, 0.0)                     # ReLU
            # dropout: eval-mode identity
            x = out.astype(jnp.bfloat16)                    # stays resident in VMEM/vregs
        else:
            logits = out[:, :n_classes]                     # prefix slice: no lane movement
            m = jnp.max(logits, axis=-1, keepdims=True)
            s = logits - m
            lse = jnp.log(jnp.sum(jnp.exp(s), axis=-1, keepdims=True))
            o_ref[...] = (s - lse).astype(o_ref.dtype)      # log_softmax, f32 epilogue


def sage_mini_forward(x, adj, w_slab, b_slab, out_channels):
    """Batched fused SAGE_Mini forward (eval mode): one pallas_call, no wrapper ops.

    x       : [B, N, F_in]  f32
    adj     : [B, N, N]     f32 binary adjacency per subgraph
    w_slab  : [2L, F, F]    bf16  (from pack_params, one-time)
    b_slab  : [L, 1, F]     f32   (from pack_params, one-time)
    returns : [B, N, out_channels] f32 log-probabilities
    """
    bsz, n, f_in = x.shape
    two_l, f_pad, _ = w_slab.shape
    num_layers = two_l // 2

    if f_in < f_pad:  # no-op for the default config (in_channels == hidden_channels)
        x = jnp.pad(x, ((0, 0), (0, 0), (0, f_pad - f_in)))

    # Advisory cost hint so XLA overlaps this tiny, launch-latency-bound call.
    flops = bsz * num_layers * (2 * n * n * f_pad + 2 * 2 * n * f_pad * f_pad)
    bytes_accessed = (bsz * n * n * 4 + bsz * n * f_pad * 4
                      + two_l * f_pad * f_pad * 2 + num_layers * f_pad * 4
                      + bsz * n * out_channels * 4)
    cost = pl.CostEstimate(flops=flops,
                           transcendentals=bsz * n * (out_channels + 1),
                           bytes_accessed=bytes_accessed)

    return pl.pallas_call(
        _sage_fused_kernel,
        out_shape=jax.ShapeDtypeStruct((bsz, n, out_channels), jnp.float32),
        grid=(bsz,),
        in_specs=[
            pl.BlockSpec((None, n, n), lambda b: (b, 0, 0)),            # adj: per-subgraph
            pl.BlockSpec((None, n, f_pad), lambda b: (b, 0, 0)),        # x:   per-subgraph
            pl.BlockSpec((two_l, f_pad, f_pad), lambda b: (0, 0, 0)),   # weights: resident
            pl.BlockSpec((num_layers, 1, f_pad), lambda b: (0, 0, 0)),  # biases:  resident
        ],
        out_specs=pl.BlockSpec((None, n, out_channels), lambda b: (b, 0, 0)),
        compiler_params=pltpu.CompilerParams(dimension_semantics=("parallel",)),
        cost_estimate=cost,
    )(adj, x, w_slab, b_slab)


def _init_linear(key, f_in, f_out):
    # deterministic Glorot-ish init (synthetic weights; not a checkpoint load)
    kw, kb = jax.random.split(key)
    scale = 1.0 / jnp.sqrt(jnp.float32(f_in))
    w = jax.random.uniform(kw, (f_in, f_out), jnp.float32, -scale, scale)
    b = jax.random.uniform(kb, (1, f_out), jnp.float32, -scale, scale)
    return w, b


def build_params(key, in_channels, hidden_channels, out_channels, num_layers):
    dims = [in_channels] + [hidden_channels] * (num_layers - 1) + [out_channels]
    params = []
    for li in range(num_layers):
        key, k_l, k_r = jax.random.split(key, 3)
        w_l, b_l = _init_linear(k_l, dims[li], dims[li + 1])
        w_r, _ = _init_linear(k_r, dims[li], dims[li + 1])  # lin_r has no bias in PyG SAGEConv
        params.append((w_l, w_r, b_l))
    return params


def pack_params(params):
    """ONE-TIME packing (not in the per-forward path): pad every layer's W_l/W_r/b to a
    common width and stack into one bf16 weight slab + one f32 bias slab."""
    num_layers = len(params)
    f_pad = max(max(w_l.shape[0], w_l.shape[1]) for (w_l, _, _) in params)
    w_slab = np.zeros((2 * num_layers, f_pad, f_pad), np.float32)
    b_slab = np.zeros((num_layers, 1, f_pad), np.float32)
    for li, (w_l, w_r, b) in enumerate(params):
        w_slab[2 * li, :w_l.shape[0], :w_l.shape[1]] = np.asarray(w_l)
        w_slab[2 * li + 1, :w_r.shape[0], :w_r.shape[1]] = np.asarray(w_r)
        b_slab[li, 0, :b.shape[1]] = np.asarray(b[0])
    return jnp.asarray(w_slab, jnp.bfloat16), jnp.asarray(b_slab, jnp.float32)


def sage_mini_reference(x, adj, params):
    """Pure-JAX f32 reference of SAGE_Mini.forward (eval mode)."""
    deg = jnp.sum(adj, axis=-1, keepdims=True)
    a_mean = adj / jnp.maximum(deg, 1.0)
    h = x
    for li, (w_l, w_r, b) in enumerate(params):
        h_agg = jnp.einsum("bij,bjf->bif", a_mean, h)
        h_new = h_agg @ w_l + h @ w_r + b
        if li < len(params) - 1:
            h_new = jnp.maximum(h_new, 0.0)  # ReLU; dropout = eval-mode identity
        h = h_new
    return jax.nn.log_softmax(h, axis=-1)


if __name__ == "__main__":
    # Small shapes consistent with the module's forward (B mini-batches of N nodes each).
    B = 2                # subgraphs per fused call (fills v7x's 2nd TC via "parallel" grid)
    N = 64               # nodes per mini-batch
    IN_CHANNELS = 32
    HIDDEN_CHANNELS = 32
    OUT_CHANNELS = 16
    NUM_LAYERS = 3

    key = jax.random.PRNGKey(0)
    k_x, k_adj, k_par = jax.random.split(key, 3)

    # node features (f32; cast to bf16 inside the kernel)
    x = jax.random.normal(k_x, (B, N, IN_CHANNELS), jnp.float32)

    # random sparse-ish graphs -> dense binary adjacency; adj[b, i, j] = 1 means node j is an
    # in-neighbor of node i (source -> target, matching PyG SAGEConv message direction).
    adj = (jax.random.uniform(k_adj, (B, N, N)) < 0.1).astype(jnp.float32)

    params = build_params(k_par, IN_CHANNELS, HIDDEN_CHANNELS, OUT_CHANNELS, NUM_LAYERS)
    w_slab, b_slab = pack_params(params)     # one-time prep; NOT in the per-forward path

    out = sage_mini_forward(x, adj, w_slab, b_slab, OUT_CHANNELS)
    out = jax.block_until_ready(out)

    assert out.shape == (B, N, OUT_CHANNELS)
    # log_softmax rows should sum (in prob space) to ~1
    assert jnp.allclose(jnp.sum(jnp.exp(out), axis=-1), 1.0, atol=1e-4)
    # bf16 MXU vs pure-f32 reference: expect ~1e-2-level absolute deviation
    ref = sage_mini_reference(x, adj, params)
    max_err = float(jnp.max(jnp.abs(out - ref)))
    assert max_err < 0.1, f"max |kernel - f32 reference| = {max_err}"
    print("KERNEL_OK")
</pallas_src>

<mosaic_0001>
module attributes {stable_mosaic.version = 11 : i64} {
  func.func @_sage_fused_kernel(%arg0: i32, %arg1: memref<1x64x64xf32, #tpu.memory_space<vmem>>, %arg2: memref<1x64x32xf32, #tpu.memory_space<vmem>>, %arg3: memref<6x32x32xbf16, #tpu.memory_space<vmem>>, %arg4: memref<3x1x32xf32, #tpu.memory_space<vmem>>, %arg5: memref<1x64x16xf32, #tpu.memory_space<vmem>>) attributes {dimension_semantics = [#tpu.dimension_semantics<parallel>], iteration_bounds = array<i64: 2>, scalar_prefetch = 0 : i64, scratch_operands = 0 : i64, tpu.core_type = #tpu.core_type<tc>, window_params = [{transform_indices = @transform_0, window_bounds = array<i64: 1, 64, 64>}, {transform_indices = @transform_1, window_bounds = array<i64: 1, 64, 32>}, {pipeline_mode = #tpu.pipeline_mode<synchronous>, transform_indices = @transform_2, window_bounds = array<i64: 6, 32, 32>}, {pipeline_mode = #tpu.pipeline_mode<synchronous>, transform_indices = @transform_3, window_bounds = array<i64: 3, 1, 32>}, {transform_indices = @transform_4, window_bounds = array<i64: 1, 64, 16>}]} {
    %c0 = arith.constant 0 : index
    %c0_0 = arith.constant 0 : index
    %c0_1 = arith.constant 0 : index
    %0 = vector.load %arg1[%c0, %c0_0, %c0_1] : memref<1x64x64xf32, #tpu.memory_space<vmem>>, vector<1x64x64xf32>
    %1 = vector.shape_cast %0 : vector<1x64x64xf32> to vector<64x64xf32>
    %2 = arith.truncf %1 : vector<64x64xf32> to vector<64x64xbf16>
    %cst = arith.constant dense<0.000000e+00> : vector<64xf32>
    %3 = vector.multi_reduction <add>, %1, %cst [1] : vector<64x64xf32> to vector<64xf32>
    %4 = vector.shape_cast %3 : vector<64xf32> to vector<64x1xf32>
    %cst_2 = arith.constant 1.000000e+00 : f32
    %5 = vector.broadcast %cst_2 : f32 to vector<64x1xf32>
    %6 = arith.maximumf %4, %5 : vector<64x1xf32>
    %cst_3 = arith.constant 1.000000e+00 : f32
    %7 = vector.broadcast %cst_3 : f32 to vector<64x1xf32>
    %8 = arith.divf %7, %6 : vector<64x1xf32>
    %c0_4 = arith.constant 0 : index
    %c0_5 = arith.constant 0 : index
    %c0_6 = arith.constant 0 : index
    %9 = vector.load %arg2[%c0_4, %c0_5, %c0_6] : memref<1x64x32xf32, #tpu.memory_space<vmem>>, vector<1x64x32xf32>
    %10 = vector.shape_cast %9 : vector<1x64x32xf32> to vector<64x32xf32>
    %11 = arith.truncf %10 : vector<64x32xf32> to vector<64x32xbf16>
    %c0_7 = arith.constant 0 : index
    %c0_8 = arith.constant 0 : index
    %c0_9 = arith.constant 0 : index
    %12 = vector.load %arg3[%c0_7, %c0_8, %c0_9] : memref<6x32x32xbf16, #tpu.memory_space<vmem>>, vector<1x32x32xbf16>
    %13 = vector.shape_cast %12 : vector<1x32x32xbf16> to vector<32x32xbf16>
    %c1 = arith.constant 1 : index
    %c0_10 = arith.constant 0 : index
    %c0_11 = arith.constant 0 : index
    %14 = vector.load %arg3[%c1, %c0_10, %c0_11] : memref<6x32x32xbf16, #tpu.memory_space<vmem>>, vector<1x32x32xbf16>
    %15 = vector.shape_cast %14 : vector<1x32x32xbf16> to vector<32x32xbf16>
    %c0_12 = arith.constant 0 : index
    %c0_13 = arith.constant 0 : index
    %c0_14 = arith.constant 0 : index
    %16 = vector.load %arg4[%c0_12, %c0_13, %c0_14] : memref<3x1x32xf32, #tpu.memory_space<vmem>>, vector<1x1x32xf32>
    %17 = vector.shape_cast %16 : vector<1x1x32xf32> to vector<1x32xf32>
    %cst_15 = arith.constant dense<0.000000e+00> : vector<64x32xf32>
    %18 = tpu.matmul %2, %11, %cst_15 {dimension_numbers = #tpu.dot_dimension_numbers<[1], [0], [0], [1], [0, 0, 1, 1], [], []>} : vector<64x64xbf16>, vector<64x32xbf16>, vector<64x32xf32> -> vector<64x32xf32>
    %19 = vector.broadcast %8 : vector<64x1xf32> to vector<64x32xf32>
    %20 = arith.mulf %18, %19 : vector<64x32xf32>
    %21 = arith.truncf %20 : vector<64x32xf32> to vector<64x32xbf16>
    %cst_16 = arith.constant dense<0.000000e+00> : vector<64x32xf32>
    %22 = tpu.matmul %21, %13, %cst_16 {dimension_numbers = #tpu.dot_dimension_numbers<[1], [0], [0], [1], [0, 0, 1, 1], [], []>} : vector<64x32xbf16>, vector<32x32xbf16>, vector<64x32xf32> -> vector<64x32xf32>
    %cst_17 = arith.constant dense<0.000000e+00> : vector<64x32xf32>
    %23 = tpu.matmul %11, %15, %cst_17 {dimension_numbers = #tpu.dot_dimension_numbers<[1], [0], [0], [1], [0, 0, 1, 1], [], []>} : vector<64x32xbf16>, vector<32x32xbf16>, vector<64x32xf32> -> vector<64x32xf32>
    %24 = arith.addf %22, %23 : vector<64x32xf32>
    %25 = vector.broadcast %17 : vector<1x32xf32> to vector<64x32xf32>
    %26 = arith.addf %24, %25 : vector<64x32xf32>
    %cst_18 = arith.constant 0.000000e+00 : f32
    %27 = vector.broadcast %cst_18 : f32 to vector<64x32xf32>
    %28 = arith.maximumf %26, %27 : vector<64x32xf32>
    %29 = arith.truncf %28 : vector<64x32xf32> to vector<64x32xbf16>
    %c2 = arith.constant 2 : index
    %c0_19 = arith.constant 0 : index
    %c0_20 = arith.constant 0 : index
    %30 = vector.load %arg3[%c2, %c0_19, %c0_20] : memref<6x32x32xbf16, #tpu.memory_space<vmem>>, vector<1x32x32xbf16>
    %31 = vector.shape_cast %30 : vector<1x32x32xbf16> to vector<32x32xbf16>
    %c3 = arith.constant 3 : index
    %c0_21 = arith.constant 0 : index
    %c0_22 = arith.constant 0 : index
    %32 = vector.load %arg3[%c3, %c0_21, %c0_22] : memref<6x32x32xbf16, #tpu.memory_space<vmem>>, vector<1x32x32xbf16>
    %33 = vector.shape_cast %32 : vector<1x32x32xbf16> to vector<32x32xbf16>
    %c1_23 = arith.constant 1 : index
    %c0_24 = arith.constant 0 : index
    %c0_25 = arith.constant 0 : index
    %34 = vector.load %arg4[%c1_23, %c0_24, %c0_25] : memref<3x1x32xf32, #tpu.memory_space<vmem>>, vector<1x1x32xf32>
    %35 = vector.shape_cast %34 : vector<1x1x32xf32> to vector<1x32xf32>
    %cst_26 = arith.constant dense<0.000000e+00> : vector<64x32xf32>
    %36 = tpu.matmul %2, %29, %cst_26 {dimension_numbers = #tpu.dot_dimension_numbers<[1], [0], [0], [1], [0, 0, 1, 1], [], []>} : vector<64x64xbf16>, vector<64x32xbf16>, vector<64x32xf32> -> vector<64x32xf32>
    %37 = vector.broadcast %8 : vector<64x1xf32> to vector<64x32xf32>
    %38 = arith.mulf %36, %37 : vector<64x32xf32>
    %39 = arith.truncf %38 : vector<64x32xf32> to vector<64x32xbf16>
    %cst_27 = arith.constant dense<0.000000e+00> : vector<64x32xf32>
    %40 = tpu.matmul %39, %31, %cst_27 {dimension_numbers = #tpu.dot_dimension_numbers<[1], [0], [0], [1], [0, 0, 1, 1], [], []>} : vector<64x32xbf16>, vector<32x32xbf16>, vector<64x32xf32> -> vector<64x32xf32>
    %cst_28 = arith.constant dense<0.000000e+00> : vector<64x32xf32>
    %41 = tpu.matmul %29, %33, %cst_28 {dimension_numbers = #tpu.dot_dimension_numbers<[1], [0], [0], [1], [0, 0, 1, 1], [], []>} : vector<64x32xbf16>, vector<32x32xbf16>, vector<64x32xf32> -> vector<64x32xf32>
    %42 = arith.addf %40, %41 : vector<64x32xf32>
    %43 = vector.broadcast %35 : vector<1x32xf32> to vector<64x32xf32>
    %44 = arith.addf %42, %43 : vector<64x32xf32>
    %cst_29 = arith.constant 0.000000e+00 : f32
    %45 = vector.broadcast %cst_29 : f32 to vector<64x32xf32>
    %46 = arith.maximumf %44, %45 : vector<64x32xf32>
    %47 = arith.truncf %46 : vector<64x32xf32> to vector<64x32xbf16>
    %c4 = arith.constant 4 : index
    %c0_30 = arith.constant 0 : index
    %c0_31 = arith.constant 0 : index
    %48 = vector.load %arg3[%c4, %c0_30, %c0_31] : memref<6x32x32xbf16, #tpu.memory_space<vmem>>, vector<1x32x32xbf16>
    %49 = vector.shape_cast %48 : vector<1x32x32xbf16> to vector<32x32xbf16>
    %c5 = arith.constant 5 : index
    %c0_32 = arith.constant 0 : index
    %c0_33 = arith.constant 0 : index
    %50 = vector.load %arg3[%c5, %c0_32, %c0_33] : memref<6x32x32xbf16, #tpu.memory_space<vmem>>, vector<1x32x32xbf16>
    %51 = vector.shape_cast %50 : vector<1x32x32xbf16> to vector<32x32xbf16>
    %c2_34 = arith.constant 2 : index
    %c0_35 = arith.constant 0 : index
    %c0_36 = arith.constant 0 : index
    %52 = vector.load %arg4[%c2_34, %c0_35, %c0_36] : memref<3x1x32xf32, #tpu.memory_space<vmem>>, vector<1x1x32xf32>
    %53 = vector.shape_cast %52 : vector<1x1x32xf32> to vector<1x32xf32>
    %cst_37 = arith.constant dense<0.000000e+00> : vector<64x32xf32>
    %54 = tpu.matmul %2, %47, %cst_37 {dimension_numbers = #tpu.dot_dimension_numbers<[1], [0], [0], [1], [0, 0, 1, 1], [], []>} : vector<64x64xbf16>, vector<64x32xbf16>, vector<64x32xf32> -> vector<64x32xf32>
    %55 = vector.broadcast %8 : vector<64x1xf32> to vector<64x32xf32>
    %56 = arith.mulf %54, %55 : vector<64x32xf32>
    %57 = arith.truncf %56 : vector<64x32xf32> to vector<64x32xbf16>
    %cst_38 = arith.constant dense<0.000000e+00> : vector<64x32xf32>
    %58 = tpu.matmul %57, %49, %cst_38 {dimension_numbers = #tpu.dot_dimension_numbers<[1], [0], [0], [1], [0, 0, 1, 1], [], []>} : vector<64x32xbf16>, vector<32x32xbf16>, vector<64x32xf32> -> vector<64x32xf32>
    %cst_39 = arith.constant dense<0.000000e+00> : vector<64x32xf32>
    %59 = tpu.matmul %47, %51, %cst_39 {dimension_numbers = #tpu.dot_dimension_numbers<[1], [0], [0], [1], [0, 0, 1, 1], [], []>} : vector<64x32xbf16>, vector<32x32xbf16>, vector<64x32xf32> -> vector<64x32xf32>
    %60 = arith.addf %58, %59 : vector<64x32xf32>
    %61 = vector.broadcast %53 : vector<1x32xf32> to vector<64x32xf32>
    %62 = arith.addf %60, %61 : vector<64x32xf32>
    %63 = vector.extract_strided_slice %62 {offsets = [0, 0], sizes = [64, 16], strides = [1, 1]} : vector<64x32xf32> to vector<64x16xf32>
    %cst_40 = arith.constant dense<0xFF800000> : vector<64xf32>
    %64 = vector.multi_reduction <maximumf>, %63, %cst_40 [1] : vector<64x16xf32> to vector<64xf32>
    %65 = vector.shape_cast %64 : vector<64xf32> to vector<64x1xf32>
    %66 = vector.broadcast %65 : vector<64x1xf32> to vector<64x16xf32>
    %67 = arith.subf %63, %66 : vector<64x16xf32>
    %68 = math.exp %67 : vector<64x16xf32>
    %cst_41 = arith.constant dense<0.000000e+00> : vector<64xf32>
    %69 = vector.multi_reduction <add>, %68, %cst_41 [1] : vector<64x16xf32> to vector<64xf32>
    %70 = vector.shape_cast %69 : vector<64xf32> to vector<64x1xf32>
    %71 = math.log %70 : vector<64x1xf32>
    %72 = vector.broadcast %71 : vector<64x1xf32> to vector<64x16xf32>
    %73 = arith.subf %67, %72 : vector<64x16xf32>
    %c0_42 = arith.constant 0 : index
    %c0_43 = arith.constant 0 : index
    %c0_44 = arith.constant 0 : index
    %74 = vector.load %arg5[%c0_42, %c0_43, %c0_44] : memref<1x64x16xf32, #tpu.memory_space<vmem>>, vector<1x64x16xf32>
    %75 = vector.shape_cast %74 : vector<1x64x16xf32> to vector<64x16xf32>
    %76 = vector.shape_cast %73 : vector<64x16xf32> to vector<1x64x16xf32>
    tpu.vector_store %arg5[%c0_42, %c0_43, %c0_44], %76 {strides = array<i32>} : memref<1x64x16xf32, #tpu.memory_space<vmem>>, vector<1x64x16xf32>,
    return
  }
  func.func @transform_0(%arg0: i32) -> (i32, i32, i32) {
    %c0_i32 = arith.constant 0 : i32
    %c0_i32_0 = arith.constant 0 : i32
    %c0_i32_1 = arith.constant 0 : i32
    return %arg0, %c0_i32, %c0_i32_0 : i32, i32, i32
  }
  func.func @transform_1(%arg0: i32) -> (i32, i32, i32) {
    %c0_i32 = arith.constant 0 : i32
    %c0_i32_0 = arith.constant 0 : i32
    %c0_i32_1 = arith.constant 0 : i32
    return %arg0, %c0_i32, %c0_i32_0 : i32, i32, i32
  }
  func.func @transform_2(%arg0: i32) -> (i32, i32, i32) {
    %c0_i32 = arith.constant 0 : i32
    %c0_i32_0 = arith.constant 0 : i32
    %c0_i32_1 = arith.constant 0 : i32
    %c0_i32_2 = arith.constant 0 : i32
    return %c0_i32, %c0_i32_0, %c0_i32_1 : i32, i32, i32
  }
  func.func @transform_3(%arg0: i32) -> (i32, i32, i32) {
    %c0_i32 = arith.constant 0 : i32
    %c0_i32_0 = arith.constant 0 : i32
    %c0_i32_1 = arith.constant 0 : i32
    %c0_i32_2 = arith.constant 0 : i32
    return %c0_i32, %c0_i32_0, %c0_i32_1 : i32, i32, i32
  }
  func.func @transform_4(%arg0: i32) -> (i32, i32, i32) {
    %c0_i32 = arith.constant 0 : i32
    %c0_i32_0 = arith.constant 0 : i32
    %c0_i32_1 = arith.constant 0 : i32
    return %arg0, %c0_i32, %c0_i32_0 : i32, i32, i32
  }
}

</mosaic_0001>

<llo_original>
// kernel: tpu_custom_call.1
$region0: #{tpu_custom_call.1}
  #allocation0 [shape = 'u32[]', space=smem, size = 0x4, offset = 0x4, fixed_abs, tag = 'smem constant byte address 0x4 - core index']
  #allocation1 [shape = 'u32[72,128]{1,0:T(1,128)}', space=vmem, size = 0x9000, scoped, tag = 'internal scratch']
  %s0 = inlined_call_operand.vmem [shape: f32[2,64,64], index: 0, kind: input, shape index: {}]
  %s1 = inlined_call_operand.vmem [shape: f32[2,64,32], index: 1, kind: input, shape index: {}]
  %s2 = inlined_call_operand.hbm [shape: bf16[6,32,32], index: 2, kind: input, shape index: {}]
  %s3 = inlined_call_operand.vmem [shape: f32[3,1,32], index: 3, kind: input, shape index: {}]
  %s4 = inlined_call_operand.vmem [shape: f32[2,64,16], index: 4, kind: output, shape index: {}]
  %s5 = sld [smem:[#allocation0]]
  $region53: #{tpu_custom_call.1} parent=0
    _
  %s7 = ssub.s32 1, %s5
  %s8 = scalar_select 0, %s7, %s5
  $region1: #{tpu_custom_call.1} parent=0
    #allocation2 [shape = 'u8[49152]{0}', space=vmem, size = 0xc000, scoped, tag = 'input window, operand 2, single buffered']
    #allocation3 [shape = 's32[2]{0}', space=sflag, size = 0x8, scoped, tag = 'scoped memory for tpu_custom_call.1']
    %9 = vsyncpa [#allocation3], 0
    loop: start=0, step=1, limit=4
    $region2: #{tpu_custom_call.1} parent=1 // loop_pre_header
      _
    $region3: #{tpu_custom_call.1} parent=1 // loop_header
      %s11 = sphi 0, %s15
      %p12 = scmp.ge.s32.totalorder %s11, 4
      %s21 = sphi 0, %s23
      %s24 = sphi 0, %s21
      %s25 = sphi 0, %s24
      %s41 = sphi 0, %s25
      %s47 = sphi 0, %s49
      %s50 = sphi 0, %s47
      %s51 = sphi 0, %s50
      %s67 = sphi 0, %s51
      %s71 = sphi 0, %s71
      %s73 = sphi 0, %s71
      %s74 = sphi 0, %s73
      %s88 = sphi 0, %s74
      %s92 = sphi 0, %s92
      %s94 = sphi 0, %s92
      %s95 = sphi 0, %s94
      %s109 = sphi 0, %s95
      %s115 = sphi 0, %s117
      %s118 = sphi 0, %s115
      %s119 = sphi 0, %s118
      %s135 = sphi 0, %s119
    $region4: #{tpu_custom_call.1} parent=1 // loop_header_branch
      %14 = sbr.rel (%p12) target = $region8
    $region5: #{tpu_custom_call.1} parent=1 // loop_body
      %s16 = ssub.s32 %s11, 1
      %s17 = ssub.s32 %s11, 2
      %s18 = sadd.s32 %s11, 1
      %s19 = ssub.s32 %s11, %s18
      %p20 = scmp.eq.s32.totalorder %s19, 0
      %s22 = sadd.s32 %s21, 1
      %s23 = scalar_select %p20, %s21, %s22
      %p26 = pneg %p20
      %p27 = scmp.eq.s32.totalorder %s11, 1
      %p28 = por %p26, %p27
      %p29 = scmp.ne.s32.totalorder %s21, %s24
      %p30 = scmp.eq.s32.totalorder %s11, 0
      %p31 = por %p29, %p30
      %p32 = scmp.ne.s32.totalorder %s21, %s24
      %p33 = scmp.eq.s32.totalorder %s16, 1
      %p34 = por %p32, %p33
      %p35 = scmp.ne.s32.totalorder %s24, %s25
      %p36 = scmp.eq.s32.totalorder %s16, 0
      %p37 = por %p35, %p36
      %p38 = scmp.ne.s32.totalorder %s24, %s25
      %p39 = scmp.eq.s32.totalorder %s17, 1
      %p40 = por %p38, %p39
      %p42 = scmp.ne.s32.totalorder %s25, %s41
      %p43 = scmp.eq.s32.totalorder %s17, 0
      %p44 = por %p42, %p43
      %s45 = ssub.s32 %s11, %s18
      %p46 = scmp.eq.s32.totalorder %s45, 0
      %s48 = sadd.s32 %s47, 1
      %s49 = scalar_select %p46, %s47, %s48
      %p52 = pneg %p46
      %p53 = scmp.eq.s32.totalorder %s11, 1
      %p54 = por %p52, %p53
      %p55 = scmp.ne.s32.totalorder %s47, %s50
      %p56 = scmp.eq.s32.totalorder %s11, 0
      %p57 = por %p55, %p56
      %p58 = scmp.ne.s32.totalorder %s47, %s50
      %p59 = scmp.eq.s32.totalorder %s16, 1
      %p60 = por %p58, %p59
      %p61 = scmp.ne.s32.totalorder %s50, %s51
      %p62 = scmp.eq.s32.totalorder %s16, 0
      %p63 = por %p61, %p62
      %p64 = scmp.ne.s32.totalorder %s50, %s51
      %p65 = scmp.eq.s32.totalorder %s17, 1
      %p66 = por %p64, %p65
      %p68 = scmp.ne.s32.totalorder %s51, %s67
      %p69 = scmp.eq.s32.totalorder %s17, 0
      %p70 = por %p68, %p69
      %s72 = sadd.s32 %s71, 1
      %p75 = scmp.eq.s32.totalorder %s11, 1
      %p76 = scmp.ne.s32.totalorder %s71, %s73
      %p77 = scmp.eq.s32.totalorder %s11, 0
      %p78 = por %p76, %p77
      %p79 = scmp.ne.s32.totalorder %s71, %s73
      %p80 = scmp.eq.s32.totalorder %s16, 1
      %p81 = por %p79, %p80
      %p82 = scmp.ne.s32.totalorder %s73, %s74
      %p83 = scmp.eq.s32.totalorder %s16, 0
      %p84 = por %p82, %p83
      %p85 = scmp.ne.s32.totalorder %s73, %s74
      %p86 = scmp.eq.s32.totalorder %s17, 1
      %p87 = por %p85, %p86
      %p89 = scmp.ne.s32.totalorder %s74, %s88
      %p90 = scmp.eq.s32.totalorder %s17, 0
      %p91 = por %p89, %p90
      %s93 = sadd.s32 %s92, 1
      %p96 = scmp.eq.s32.totalorder %s11, 1
      %p97 = scmp.ne.s32.totalorder %s92, %s94
      %p98 = scmp.eq.s32.totalorder %s11, 0
      %p99 = por %p97, %p98
      %p100 = scmp.ne.s32.totalorder %s92, %s94
      %p101 = scmp.eq.s32.totalorder %s16, 1
      %p102 = por %p100, %p101
      %p103 = scmp.ne.s32.totalorder %s94, %s95
      %p104 = scmp.eq.s32.totalorder %s16, 0
      %p105 = por %p103, %p104
      %p106 = scmp.ne.s32.totalorder %s94, %s95
      %p107 = scmp.eq.s32.totalorder %s17, 1
      %p108 = por %p106, %p107
      %p110 = scmp.ne.s32.totalorder %s95, %s109
      %p111 = scmp.eq.s32.totalorder %s17, 0
      %p112 = por %p110, %p111
      %s113 = ssub.s32 %s11, %s18
      %p114 = scmp.eq.s32.totalorder %s113, 0
      %s116 = sadd.s32 %s115, 1
      %s117 = scalar_select %p114, %s115, %s116
      %p120 = pneg %p114
      %p121 = scmp.eq.s32.totalorder %s11, 1
      %p122 = por %p120, %p121
      %p123 = scmp.ne.s32.totalorder %s115, %s118
      %p124 = scmp.eq.s32.totalorder %s11, 0
      %p125 = por %p123, %p124
      %p126 = scmp.ne.s32.totalorder %s115, %s118
      %p127 = scmp.eq.s32.totalorder %s16, 1
      %p128 = por %p126, %p127
      %p129 = scmp.ne.s32.totalorder %s118, %s119
      %p130 = scmp.eq.s32.totalorder %s16, 0
      %p131 = por %p129, %p130
      %p132 = scmp.ne.s32.totalorder %s118, %s119
      %p133 = scmp.eq.s32.totalorder %s17, 1
      %p134 = por %p132, %p133
      %p136 = scmp.ne.s32.totalorder %s119, %s135
      %p137 = scmp.eq.s32.totalorder %s17, 0
      %p138 = por %p136, %p137
      %p139 = scmp.le.s32.totalorder 1, %s11
      %p140 = scmp.lt.s32.totalorder %s11, 3
      %p141 = pnand %p139, %p140
      %p142 = pneg %p141
      // Predicated region
      $region9: #{tpu_custom_call.1} parent=5 // pred_check
        _
      $region10: #{tpu_custom_call.1} parent=5 // pred_check_branch
        %144 = sbr.rel (%p141) target = $region12
      $region11: #{tpu_custom_call.1} parent=5 // pred_region
        %s145 = ssub.s32 %s11, 1
        // Predicated region
        $region13: #{tpu_custom_call.1} parent=11 // pred_check
          %p146 = pneg %p84
        $region14: #{tpu_custom_call.1} parent=11 // pred_check_branch
          %148 = sbr.rel (%p146) target = $region16
        $region15: #{tpu_custom_call.1} parent=11 // pred_region
          %150 = vsyncadd [#allocation3], 0
          %s151 = sshll.u32 %s2, 4
          %s152 = int_to_ptr.hbm [resolvable:$true] %s151
          %s153 = sshll.u32 [#allocation2], 4
          %s154 = int_to_ptr.vmem [resolvable:$true] %s153
          %159 = dma.hbm_to_vmem [thread:$0]  %s152, 1536, %s154, [#allocation3], 64, 64, 4
        $region16: #{tpu_custom_call.1} parent=11 // pred_fallthru
          _
        // Predicated region
        $region17: #{tpu_custom_call.1} parent=11 // pred_check
          %p160 = pneg %p105
        $region18: #{tpu_custom_call.1} parent=11 // pred_check_branch
          %162 = sbr.rel (%p160) target = $region20
        $region19: #{tpu_custom_call.1} parent=11 // pred_region
          _
        $region20: #{tpu_custom_call.1} parent=11 // pred_fallthru
          _
      $region12: #{tpu_custom_call.1} parent=5 // pred_fallthru
        _
      %p163 = scmp.lt.s32.totalorder %s11, 2
      // Predicated region
      $region21: #{tpu_custom_call.1} parent=5 // pred_check
        %p164 = pneg %p163
      $region22: #{tpu_custom_call.1} parent=5 // pred_check_branch
        %166 = sbr.rel (%p164) target = $region24
      $region23: #{tpu_custom_call.1} parent=5 // pred_region
        // Predicated region
        $region25: #{tpu_custom_call.1} parent=23 // pred_check
          %p167 = pneg %p31
        $region26: #{tpu_custom_call.1} parent=23 // pred_check_branch
          %169 = sbr.rel (%p167) target = $region28
        $region27: #{tpu_custom_call.1} parent=23 // pred_region
          %p170 = scmp.lt.s32.totalorder %s11, 1
          %s171 = scalar_select %p170, %s11, 1
          %s172 = smul.addr %s171, 8
          %s173 = smul.addr %s172, 8
          %s174 = scalar_lea.vmem %s0, %s173
        $region28: #{tpu_custom_call.1} parent=23 // pred_fallthru
          _
        // Predicated region
        $region29: #{tpu_custom_call.1} parent=23 // pred_check
          %p175 = pneg %p57
        $region30: #{tpu_custom_call.1} parent=23 // pred_check_branch
          %177 = sbr.rel (%p175) target = $region32
        $region31: #{tpu_custom_call.1} parent=23 // pred_region
          %p178 = scmp.lt.s32.totalorder %s11, 1
          %s179 = scalar_select %p178, %s11, 1
          %s180 = smul.addr %s179, 8
          %s181 = smul.addr %s180, 8
          %s182 = scalar_lea.vmem %s1, %s181
        $region32: #{tpu_custom_call.1} parent=23 // pred_fallthru
          _
      $region24: #{tpu_custom_call.1} parent=5 // pred_fallthru
        _
      %p183 = scmp.le.s32.totalorder 1, %s11
      %p184 = scmp.lt.s32.totalorder %s11, 3
      %p185 = pnand %p183, %p184
      %p186 = pneg %p185
      // Predicated region
      $region33: #{tpu_custom_call.1} parent=5 // pred_check
        _
      $region34: #{tpu_custom_call.1} parent=5 // pred_check_branch
        %188 = sbr.rel (%p185) target = $region36
      $region35: #{tpu_custom_call.1} parent=5 // pred_region
        %s189 = ssub.s32 %s11, 1
        // Predicated region
        $region37: #{tpu_custom_call.1} parent=35 // pred_check
          %p190 = pneg %p84
        $region38: #{tpu_custom_call.1} parent=35 // pred_check_branch
          %192 = sbr.rel (%p190) target = $region40
        $region39: #{tpu_custom_call.1} parent=35 // pred_region
          %194 = dma.done [#allocation3], 1536
        $region40: #{tpu_custom_call.1} parent=35 // pred_fallthru
          _
        %p195 = scmp.lt.s32.totalorder %s16, 1
        %s196 = scalar_select %p195, %s16, 1
        %s197 = smul.addr %s196, 8
        %s198 = smul.addr %s197, 8
        %s199 = scalar_lea.vmem %s0, %s198
        %p200 = pneg %p37
        %p201 = pneg %p34
        %p202 = scmp.lt.s32.totalorder %s16, 1
        %s203 = scalar_select %p202, %s16, 1
        %s204 = smul.addr %s203, 8
        %s205 = smul.addr %s204, 8
        %s206 = scalar_lea.vmem %s1, %s205
        %p207 = pneg %p63
        %p208 = pneg %p60
        %p209 = pneg %p84
        %p210 = pneg %p81
        %p211 = pneg %p105
        %p212 = pneg %p102
        %p213 = pneg %p131
        %p214 = pneg %p128
        %p215 = scmp.lt.s32.totalorder %s16, 1
        %s216 = scalar_select %p215, %s16, 1
        %s217 = smul.addr %s216, 8
        %s218 = smul.addr %s217, 8
        %s219 = scalar_lea.vmem %s4, %s218
        %p220 = scmp.lt.s32.totalorder %s16, 1
        %s221 = scalar_select %p220, %s16, 1
        %s222 = smul.addr %s221, 8
        %s223 = smul.addr %s222, 8
        %s224 = scalar_lea.vmem %s0, %s223
        %p225 = scmp.lt.s32.totalorder %s16, 1
        %s226 = scalar_select %p225, %s16, 1
        %s227 = smul.addr %s226, 8
        %s228 = smul.addr %s227, 8
        %s229 = scalar_lea.vmem %s1, %s228
        %p230 = scmp.lt.s32.totalorder %s16, 1
        %s231 = scalar_select %p230, %s16, 1
        %s232 = smul.addr %s231, 8
        %s233 = smul.addr %s232, 8
        %s234 = scalar_lea.vmem %s4, %s233
        %v236 = vld [vmem:[%s224] sm:$0xff]
        %v237 = vld [vmem:[%s224 + $0x8] sm:$0xff]
        %v238 = vld [vmem:[%s224 + $0x10] sm:$0xff]
        %v239 = vld [vmem:[%s224 + $0x18] sm:$0xff]
        %v240 = vld [vmem:[%s224 + $0x20] sm:$0xff]
        %v241 = vld [vmem:[%s224 + $0x28] sm:$0xff]
        %v242 = vld [vmem:[%s224 + $0x30] sm:$0xff]
        %v243 = vld [vmem:[%s224 + $0x38] sm:$0xff]
        %v244 = vpack.c.bf16 %v237, %v236
        %v245 = vpack.c.bf16 %v239, %v238
        %v246 = vpack.c.bf16 %v241, %v240
        %v247 = vpack.c.bf16 %v243, %v242
        %vm248 = vcmask 523264
        %v249 = vsel %vm248, %v236, 0.0
        %250 = vadd.xlane.f32.xlu0 %v249
        %v251 = vpop.xlane.xlu0 %250
        %v252 = vsel %vm248, %v237, 0.0
        %253 = vadd.xlane.f32.xlu0 %v252
        %v254 = vpop.xlane.xlu0 %253
        %v255 = vsel %vm248, %v238, 0.0
        %256 = vadd.xlane.f32.xlu0 %v255
        %v257 = vpop.xlane.xlu0 %256
        %v258 = vsel %vm248, %v239, 0.0
        %259 = vadd.xlane.f32.xlu0 %v258
        %v260 = vpop.xlane.xlu0 %259
        %v261 = vsel %vm248, %v240, 0.0
        %262 = vadd.xlane.f32.xlu0 %v261
        %v263 = vpop.xlane.xlu0 %262
        %v264 = vsel %vm248, %v241, 0.0
        %265 = vadd.xlane.f32.xlu0 %v264
        %v266 = vpop.xlane.xlu0 %265
        %v267 = vsel %vm248, %v242, 0.0
        %268 = vadd.xlane.f32.xlu0 %v267
        %v269 = vpop.xlane.xlu0 %268
        %v270 = vsel %vm248, %v243, 0.0
        %271 = vadd.xlane.f32.xlu0 %v270
        %v272 = vpop.xlane.xlu0 %271
        %v273 = vmax.f32 %v251, 1.0
        %v274 = vmax.f32 %v254, 1.0
        %v275 = vmax.f32 %v257, 1.0
        %v276 = vmax.f32 %v260, 1.0
        %v277 = vmax.f32 %v263, 1.0
        %v278 = vmax.f32 %v266, 1.0
        %v279 = vmax.f32 %v269, 1.0
        %v280 = vmax.f32 %v272, 1.0
        %v281 = vrcp.pop %v273
        %v282 = vmul.f32 %v273, %v281
        %v283 = vsub.f32 1.0, %v282
        %v284 = vmul.f32 %v281, %v283
        %v285 = vadd.f32 %v281, %v284
        %vm286 = vweird.f32 %v273
        %vm287 = vweird.f32 %v281
        %vm288 = vmor %vm286, %vm287
        %v289 = vsel %vm288, %v281, %v285
        %v290 = vand.u32 2147483647, %v273
        %vm291 = vcmp.eq.f32.partialorder %v290, 8.507059e+37
        %v292 = vand.u32 %v273, 2147483648
        %v293 = vor.u32 1.1754944e-38, %v292
        %v294 = vsel %vm291, %v293, %v289
        %v295 = vmul.f32 1.0, %v294
        %v296 = vrcp.pop %v274
        %v297 = vmul.f32 %v274, %v296
        %v298 = vsub.f32 1.0, %v297
        %v299 = vmul.f32 %v296, %v298
        %v300 = vadd.f32 %v296, %v299
        %vm301 = vweird.f32 %v274
        %vm302 = vweird.f32 %v296
        %vm303 = vmor %vm301, %vm302
        %v304 = vsel %vm303, %v296, %v300
        %v305 = vand.u32 2147483647, %v274
        %vm306 = vcmp.eq.f32.partialorder %v305, 8.507059e+37
        %v307 = vand.u32 %v274, 2147483648
        %v308 = vor.u32 1.1754944e-38, %v307
        %v309 = vsel %vm306, %v308, %v304
        %v310 = vmul.f32 1.0, %v309
        %v311 = vrcp.pop %v275
        %v312 = vmul.f32 %v275, %v311
        %v313 = vsub.f32 1.0, %v312
        %v314 = vmul.f32 %v311, %v313
        %v315 = vadd.f32 %v311, %v314
        %vm316 = vweird.f32 %v275
        %vm317 = vweird.f32 %v311
        %vm318 = vmor %vm316, %vm317
        %v319 = vsel %vm318, %v311, %v315
        %v320 = vand.u32 2147483647, %v275
        %vm321 = vcmp.eq.f32.partialorder %v320, 8.507059e+37
        %v322 = vand.u32 %v275, 2147483648
        %v323 = vor.u32 1.1754944e-38, %v322
        %v324 = vsel %vm321, %v323, %v319
        %v325 = vmul.f32 1.0, %v324
        %v326 = vrcp.pop %v276
        %v327 = vmul.f32 %v276, %v326
        %v328 = vsub.f32 1.0, %v327
        %v329 = vmul.f32 %v326, %v328
        %v330 = vadd.f32 %v326, %v329
        %vm331 = vweird.f32 %v276
        %vm332 = vweird.f32 %v326
        %vm333 = vmor %vm331, %vm332
        %v334 = vsel %vm333, %v326, %v330
        %v335 = vand.u32 2147483647, %v276
        %vm336 = vcmp.eq.f32.partialorder %v335, 8.507059e+37
        %v337 = vand.u32 %v276, 2147483648
        %v338 = vor.u32 1.1754944e-38, %v337
        %v339 = vsel %vm336, %v338, %v334
        %v340 = vmul.f32 1.0, %v339
        %v341 = vrcp.pop %v277
        %v342 = vmul.f32 %v277, %v341
        %v343 = vsub.f32 1.0, %v342
        %v344 = vmul.f32 %v341, %v343
        %v345 = vadd.f32 %v341, %v344
        %vm346 = vweird.f32 %v277
        %vm347 = vweird.f32 %v341
        %vm348 = vmor %vm346, %vm347
        %v349 = vsel %vm348, %v341, %v345
        %v350 = vand.u32 2147483647, %v277
        %vm351 = vcmp.eq.f32.partialorder %v350, 8.507059e+37
        %v352 = vand.u32 %v277, 2147483648
        %v353 = vor.u32 1.1754944e-38, %v352
        %v354 = vsel %vm351, %v353, %v349
        %v355 = vmul.f32 1.0, %v354
        %v356 = vrcp.pop %v278
        %v357 = vmul.f32 %v278, %v356
        %v358 = vsub.f32 1.0, %v357
        %v359 = vmul.f32 %v356, %v358
        %v360 = vadd.f32 %v356, %v359
        %vm361 = vweird.f32 %v278
        %vm362 = vweird.f32 %v356
        %vm363 = vmor %vm361, %vm362
        %v364 = vsel %vm363, %v356, %v360
        %v365 = vand.u32 2147483647, %v278
        %vm366 = vcmp.eq.f32.partialorder %v365, 8.507059e+37
        %v367 = vand.u32 %v278, 2147483648
        %v368 = vor.u32 1.1754944e-38, %v367
        %v369 = vsel %vm366, %v368, %v364
        %v370 = vmul.f32 1.0, %v369
        %v371 = vrcp.pop %v279
        %v372 = vmul.f32 %v279, %v371
        %v373 = vsub.f32 1.0, %v372
        %v374 = vmul.f32 %v371, %v373
        %v375 = vadd.f32 %v371, %v374
        %vm376 = vweird.f32 %v279
        %vm377 = vweird.f32 %v371
        %vm378 = vmor %vm376, %vm377
        %v379 = vsel %vm378, %v371, %v375
        %v380 = vand.u32 2147483647, %v279
        %vm381 = vcmp.eq.f32.partialorder %v380, 8.507059e+37
        %v382 = vand.u32 %v279, 2147483648
        %v383 = vor.u32 1.1754944e-38, %v382
        %v384 = vsel %vm381, %v383, %v379
        %v385 = vmul.f32 1.0, %v384
        %v386 = vrcp.pop %v280
        %v387 = vmul.f32 %v280, %v386
        %v388 = vsub.f32 1.0, %v387
        %v389 = vmul.f32 %v386, %v388
        %v390 = vadd.f32 %v386, %v389
        %vm391 = vweird.f32 %v280
        %vm392 = vweird.f32 %v386
        %vm393 = vmor %vm391, %vm392
        %v394 = vsel %vm393, %v386, %v390
        %v395 = vand.u32 2147483647, %v280
        %vm396 = vcmp.eq.f32.partialorder %v395, 8.507059e+37
        %v397 = vand.u32 %v280, 2147483648
        %v398 = vor.u32 1.1754944e-38, %v397
        %v399 = vsel %vm396, %v398, %v394
        %v400 = vmul.f32 1.0, %v399
        %v401 = vld [vmem:[%s229] sm:$0xff]
        %v402 = vld [vmem:[%s229 + $0x8] sm:$0xff]
        %v403 = vld [vmem:[%s229 + $0x10] sm:$0xff]
        %v404 = vld [vmem:[%s229 + $0x18] sm:$0xff]
        %v405 = vld [vmem:[%s229 + $0x20] sm:$0xff]
        %v406 = vld [vmem:[%s229 + $0x28] sm:$0xff]
        %v407 = vld [vmem:[%s229 + $0x30] sm:$0xff]
        %v408 = vld [vmem:[%s229 + $0x38] sm:$0xff]
        %v409 = vpack.c.bf16 %v402, %v401
        %v410 = vpack.c.bf16 %v404, %v403
        %v411 = vpack.c.bf16 %v406, %v405
        %v412 = vpack.c.bf16 %v408, %v407
        %v413 = vld [vmem:[#allocation2] sm:$0xf]
        %v414 = vld [vmem:[#allocation2 + $0x4] sm:$0xf]
        %v415 = vld [vmem:[#allocation2 + $0x8] sm:$0xf]
        %v416 = vld [vmem:[#allocation2 + $0xc] sm:$0xf]
        %s417 = scalar_lea.vmem [#allocation2], 16
        %v418 = vld [vmem:[%s417] sm:$0xf]
        %v419 = vld [vmem:[%s417 + $0x4] sm:$0xf]
        %v420 = vld [vmem:[%s417 + $0x8] sm:$0xf]
        %v421 = vld [vmem:[%s417 + $0xc] sm:$0xf]
        %v422 = vld [vmem:[%s3] sm:$0x1]
        %v424 = vsel %vm248, %v244, 0
        %v427 = vsel %vm248, %v245, 0
        %v430 = vsel %vm248, %v246, 0
        %v433 = vsel %vm248, %v247, 0
        %435 = vmatpush.bf16.msra.mxu0 0
        %436 = vmatpush.bf16.msra.mxu0 0
        %437 = vmatpush.bf16.msra.mxu0 0
        %438 = vmatpush.bf16.msra.mxu0 0
        %439 = vmatpush.bf16.msra.mxu0 %v412
        %440 = vmatpush.bf16.msra.mxu0 %v411
        %441 = vmatpush.bf16.msra.mxu0 %v410
        %442 = vmatpush.bf16.msra.mxu0 %v409
        %443 = vmatmul.bf16.gmra.mxu0 %v424
        %v444 = vpop.f32.mrf.mxu0
        %v445 = vadd.f32 0.0, %v444
        %v446 = vpop.f32.mrf.mxu0
        %v447 = vadd.f32 0.0, %v446
        %448 = vmatmul.bf16.gmra.mxu0 %v427
        %v449 = vpop.f32.mrf.mxu0
        %v450 = vadd.f32 0.0, %v449
        %v451 = vpop.f32.mrf.mxu0
        %v452 = vadd.f32 0.0, %v451
        %453 = vmatmul.bf16.gmra.mxu0 %v430
        %v454 = vpop.f32.mrf.mxu0
        %v455 = vadd.f32 0.0, %v454
        %v456 = vpop.f32.mrf.mxu0
        %v457 = vadd.f32 0.0, %v456
        %458 = vmatmul.bf16.gmra.mxu0 %v433
        %v459 = vpop.f32.mrf.mxu0
        %v460 = vadd.f32 0.0, %v459
        %v461 = vpop.f32.mrf.mxu0
        %v462 = vadd.f32 0.0, %v461
        %463 = vdwg.mxu0
        %v464 = vmul.f32 %v445, %v295
        %v465 = vmul.f32 %v447, %v310
        %v466 = vmul.f32 %v450, %v325
        %v467 = vmul.f32 %v452, %v340
        %v468 = vmul.f32 %v455, %v355
        %v469 = vmul.f32 %v457, %v370
        %v470 = vmul.f32 %v460, %v385
        %v471 = vmul.f32 %v462, %v400
        %v472 = vpack.c.bf16 %v465, %v464
        %v473 = vpack.c.bf16 %v467, %v466
        %v474 = vpack.c.bf16 %v469, %v468
        %v475 = vpack.c.bf16 %v471, %v470
        %v480 = vunpack.c.l.b16 %v418
        %v481 = vunpack.c.l.b16 %v419
        %v482 = vunpack.c.l.b16 %v420
        %v483 = vunpack.c.l.b16 %v421
        %v484 = vpack.c.b16 %v481, %v480
        %v485 = vpack.c.b16 %v483, %v482
        %vm488 = vcmask 261120
        %v490 = vsel %vm488, %v409, 0
        %v493 = vsel %vm488, %v410, 0
        %v496 = vsel %vm488, %v411, 0
        %v499 = vsel %vm488, %v412, 0
        %501 = vmatpush.bf16.msra.mxu0 0
        %502 = vmatpush.bf16.msra.mxu0 0
        %503 = vmatpush.bf16.msra.mxu0 0
        %504 = vmatpush.bf16.msra.mxu0 0
        %505 = vmatpush.bf16.msra.mxu0 0
        %506 = vmatpush.bf16.msra.mxu0 0
        %507 = vmatpush.bf16.msra.mxu0 %v485
        %508 = vmatpush.bf16.msra.mxu0 %v484
        %509 = vmatmul.bf16.gmra.mxu0 %v490
        %v510 = vpop.f32.mrf.mxu0
        %v511 = vadd.f32 0.0, %v510
        %v512 = vpop.f32.mrf.mxu0
        %v513 = vadd.f32 0.0, %v512
        %514 = vmatmul.bf16.gmra.mxu0 %v493
        %v515 = vpop.f32.mrf.mxu0
        %v516 = vadd.f32 0.0, %v515
        %v517 = vpop.f32.mrf.mxu0
        %v518 = vadd.f32 0.0, %v517
        %519 = vmatmul.bf16.gmra.mxu0 %v496
        %v520 = vpop.f32.mrf.mxu0
        %v521 = vadd.f32 0.0, %v520
        %v522 = vpop.f32.mrf.mxu0
        %v523 = vadd.f32 0.0, %v522
        %524 = vmatmul.bf16.gmra.mxu0 %v499
        %v525 = vpop.f32.mrf.mxu0
        %v526 = vadd.f32 0.0, %v525
        %v527 = vpop.f32.mrf.mxu0
        %v528 = vadd.f32 0.0, %v527
        %529 = vdwg.mxu0
        %v534 = vunpack.c.l.b16 %v413
        %v535 = vunpack.c.l.b16 %v414
        %v536 = vunpack.c.l.b16 %v415
        %v537 = vunpack.c.l.b16 %v416
        %v538 = vpack.c.b16 %v535, %v534
        %v539 = vpack.c.b16 %v537, %v536
        %v543 = vsel %vm488, %v472, 0
        %v546 = vsel %vm488, %v473, 0
        %v549 = vsel %vm488, %v474, 0
        %v552 = vsel %vm488, %v475, 0
        %554 = vmatpush.bf16.msra.mxu0 0
        %555 = vmatpush.bf16.msra.mxu0 0
        %556 = vmatpush.bf16.msra.mxu0 0
        %557 = vmatpush.bf16.msra.mxu0 0
        %558 = vmatpush.bf16.msra.mxu0 0
        %559 = vmatpush.bf16.msra.mxu0 0
        %560 = vmatpush.bf16.msra.mxu0 %v539
        %561 = vmatpush.bf16.msra.mxu0 %v538
        %562 = vmatmul.bf16.gmra.mxu0 %v543
        %v563 = vpop.f32.mrf.mxu0
        %v564 = vadd.f32 %v511, %v563
        %v565 = vpop.f32.mrf.mxu0
        %v566 = vadd.f32 %v513, %v565
        %567 = vmatmul.bf16.gmra.mxu0 %v546
        %v568 = vpop.f32.mrf.mxu0
        %v569 = vadd.f32 %v516, %v568
        %v570 = vpop.f32.mrf.mxu0
        %v571 = vadd.f32 %v518, %v570
        %572 = vmatmul.bf16.gmra.mxu0 %v549
        %v573 = vpop.f32.mrf.mxu0
        %v574 = vadd.f32 %v521, %v573
        %v575 = vpop.f32.mrf.mxu0
        %v576 = vadd.f32 %v523, %v575
        %577 = vmatmul.bf16.gmra.mxu0 %v552
        %v578 = vpop.f32.mrf.mxu0
        %v579 = vadd.f32 %v526, %v578
        %v580 = vpop.f32.mrf.mxu0
        %v581 = vadd.f32 %v528, %v580
        %582 = vdwg.mxu0
        %v584 = vperm.slane %v422, 0
        %v586 = vadd.f32 %v564, %v584
        %v587 = vadd.f32 %v566, %v584
        %v588 = vadd.f32 %v569, %v584
        %v589 = vadd.f32 %v571, %v584
        %v590 = vadd.f32 %v574, %v584
        %v591 = vadd.f32 %v576, %v584
        %v592 = vadd.f32 %v579, %v584
        %v593 = vadd.f32 %v581, %v584
        %v594 = vmax.f32 %v586, 0.0
        %v595 = vmax.f32 %v587, 0.0
        %v596 = vmax.f32 %v588, 0.0
        %v597 = vmax.f32 %v589, 0.0
        %v598 = vmax.f32 %v590, 0.0
        %v599 = vmax.f32 %v591, 0.0
        %v600 = vmax.f32 %v592, 0.0
        %v601 = vmax.f32 %v593, 0.0
        %v602 = vpack.c.bf16 %v595, %v594
        %v603 = vpack.c.bf16 %v597, %v596
        %v604 = vpack.c.bf16 %v599, %v598
        %v605 = vpack.c.bf16 %v601, %v600
        %s606 = scalar_lea.vmem [#allocation2], 32
        %v607 = vld [vmem:[%s606] sm:$0xf]
        %v608 = vld [vmem:[%s606 + $0x4] sm:$0xf]
        %v609 = vld [vmem:[%s606 + $0x8] sm:$0xf]
        %v610 = vld [vmem:[%s606 + $0xc] sm:$0xf]
        %s611 = scalar_lea.vmem [#allocation2], 48
        %v612 = vld [vmem:[%s611] sm:$0xf]
        %v613 = vld [vmem:[%s611 + $0x4] sm:$0xf]
        %v614 = vld [vmem:[%s611 + $0x8] sm:$0xf]
        %v615 = vld [vmem:[%s611 + $0xc] sm:$0xf]
        %s616 = scalar_lea.vmem %s3, 1
        %v617 = vld [vmem:[%s616] sm:$0x1]
        %618 = vmatpush.bf16.msra.mxu0 0
        %619 = vmatpush.bf16.msra.mxu0 0
        %620 = vmatpush.bf16.msra.mxu0 0
        %621 = vmatpush.bf16.msra.mxu0 0
        %622 = vmatpush.bf16.msra.mxu0 %v605
        %623 = vmatpush.bf16.msra.mxu0 %v604
        %624 = vmatpush.bf16.msra.mxu0 %v603
        %625 = vmatpush.bf16.msra.mxu0 %v602
        %626 = vmatmul.bf16.gmra.mxu0 %v424
        %v627 = vpop.f32.mrf.mxu0
        %v628 = vadd.f32 0.0, %v627
        %v629 = vpop.f32.mrf.mxu0
        %v630 = vadd.f32 0.0, %v629
        %631 = vmatmul.bf16.gmra.mxu0 %v427
        %v632 = vpop.f32.mrf.mxu0
        %v633 = vadd.f32 0.0, %v632
        %v634 = vpop.f32.mrf.mxu0
        %v635 = vadd.f32 0.0, %v634
        %636 = vmatmul.bf16.gmra.mxu0 %v430
        %v637 = vpop.f32.mrf.mxu0
        %v638 = vadd.f32 0.0, %v637
        %v639 = vpop.f32.mrf.mxu0
        %v640 = vadd.f32 0.0, %v639
        %641 = vmatmul.bf16.gmra.mxu0 %v433
        %v642 = vpop.f32.mrf.mxu0
        %v643 = vadd.f32 0.0, %v642
        %v644 = vpop.f32.mrf.mxu0
        %v645 = vadd.f32 0.0, %v644
        %646 = vdwg.mxu0
        %v647 = vmul.f32 %v628, %v295
        %v648 = vmul.f32 %v630, %v310
        %v649 = vmul.f32 %v633, %v325
        %v650 = vmul.f32 %v635, %v340
        %v651 = vmul.f32 %v638, %v355
        %v652 = vmul.f32 %v640, %v370
        %v653 = vmul.f32 %v643, %v385
        %v654 = vmul.f32 %v645, %v400
        %v655 = vpack.c.bf16 %v648, %v647
        %v656 = vpack.c.bf16 %v650, %v649
        %v657 = vpack.c.bf16 %v652, %v651
        %v658 = vpack.c.bf16 %v654, %v653
        %v663 = vunpack.c.l.b16 %v612
        %v664 = vunpack.c.l.b16 %v613
        %v665 = vunpack.c.l.b16 %v614
        %v666 = vunpack.c.l.b16 %v615
        %v667 = vpack.c.b16 %v664, %v663
        %v668 = vpack.c.b16 %v666, %v665
        %v672 = vsel %vm488, %v602, 0
        %v675 = vsel %vm488, %v603, 0
        %v678 = vsel %vm488, %v604, 0
        %v681 = vsel %vm488, %v605, 0
        %683 = vmatpush.bf16.msra.mxu0 0
        %684 = vmatpush.bf16.msra.mxu0 0
        %685 = vmatpush.bf16.msra.mxu0 0
        %686 = vmatpush.bf16.msra.mxu0 0
        %687 = vmatpush.bf16.msra.mxu0 0
        %688 = vmatpush.bf16.msra.mxu0 0
        %689 = vmatpush.bf16.msra.mxu0 %v668
        %690 = vmatpush.bf16.msra.mxu0 %v667
        %691 = vmatmul.bf16.gmra.mxu0 %v672
        %v692 = vpop.f32.mrf.mxu0
        %v693 = vadd.f32 0.0, %v692
        %v694 = vpop.f32.mrf.mxu0
        %v695 = vadd.f32 0.0, %v694
        %696 = vmatmul.bf16.gmra.mxu0 %v675
        %v697 = vpop.f32.mrf.mxu0
        %v698 = vadd.f32 0.0, %v697
        %v699 = vpop.f32.mrf.mxu0
        %v700 = vadd.f32 0.0, %v699
        %701 = vmatmul.bf16.gmra.mxu0 %v678
        %v702 = vpop.f32.mrf.mxu0
        %v703 = vadd.f32 0.0, %v702
        %v704 = vpop.f32.mrf.mxu0
        %v705 = vadd.f32 0.0, %v704
        %706 = vmatmul.bf16.gmra.mxu0 %v681
        %v707 = vpop.f32.mrf.mxu0
        %v708 = vadd.f32 0.0, %v707
        %v709 = vpop.f32.mrf.mxu0
        %v710 = vadd.f32 0.0, %v709
        %711 = vdwg.mxu0
        %v716 = vunpack.c.l.b16 %v607
        %v717 = vunpack.c.l.b16 %v608
        %v718 = vunpack.c.l.b16 %v609
        %v719 = vunpack.c.l.b16 %v610
        %v720 = vpack.c.b16 %v717, %v716
        %v721 = vpack.c.b16 %v719, %v718
        %v725 = vsel %vm488, %v655, 0
        %v728 = vsel %vm488, %v656, 0
        %v731 = vsel %vm488, %v657, 0
        %v734 = vsel %vm488, %v658, 0
        %736 = vmatpush.bf16.msra.mxu0 0
        %737 = vmatpush.bf16.msra.mxu0 0
        %738 = vmatpush.bf16.msra.mxu0 0
        %739 = vmatpush.bf16.msra.mxu0 0
        %740 = vmatpush.bf16.msra.mxu0 0
        %741 = vmatpush.bf16.msra.mxu0 0
        %742 = vmatpush.bf16.msra.mxu0 %v721
        %743 = vmatpush.bf16.msra.mxu0 %v720
        %744 = vmatmul.bf16.gmra.mxu0 %v725
        %v745 = vpop.f32.mrf.mxu0
        %v746 = vadd.f32 %v693, %v745
        %v747 = vpop.f32.mrf.mxu0
        %v748 = vadd.f32 %v695, %v747
        %749 = vmatmul.bf16.gmra.mxu0 %v728
        %v750 = vpop.f32.mrf.mxu0
        %v751 = vadd.f32 %v698, %v750
        %v752 = vpop.f32.mrf.mxu0
        %v753 = vadd.f32 %v700, %v752
        %754 = vmatmul.bf16.gmra.mxu0 %v731
        %v755 = vpop.f32.mrf.mxu0
        %v756 = vadd.f32 %v703, %v755
        %v757 = vpop.f32.mrf.mxu0
        %v758 = vadd.f32 %v705, %v757
        %759 = vmatmul.bf16.gmra.mxu0 %v734
        %v760 = vpop.f32.mrf.mxu0
        %v761 = vadd.f32 %v708, %v760
        %v762 = vpop.f32.mrf.mxu0
        %v763 = vadd.f32 %v710, %v762
        %764 = vdwg.mxu0
        %v766 = vperm.slane %v617, 0
        %v768 = vadd.f32 %v746, %v766
        %v769 = vadd.f32 %v748, %v766
        %v770 = vadd.f32 %v751, %v766
        %v771 = vadd.f32 %v753, %v766
        %v772 = vadd.f32 %v756, %v766
        %v773 = vadd.f32 %v758, %v766
        %v774 = vadd.f32 %v761, %v766
        %v775 = vadd.f32 %v763, %v766
        %v776 = vmax.f32 %v768, 0.0
        %v777 = vmax.f32 %v769, 0.0
        %v778 = vmax.f32 %v770, 0.0
        %v779 = vmax.f32 %v771, 0.0
        %v780 = vmax.f32 %v772, 0.0
        %v781 = vmax.f32 %v773, 0.0
        %v782 = vmax.f32 %v774, 0.0
        %v783 = vmax.f32 %v775, 0.0
        %v784 = vpack.c.bf16 %v777, %v776
        %v785 = vpack.c.bf16 %v779, %v778
        %v786 = vpack.c.bf16 %v781, %v780
        %v787 = vpack.c.bf16 %v783, %v782
        %s788 = scalar_lea.vmem [#allocation2], 64
        %v789 = vld [vmem:[%s788] sm:$0xf]
        %v790 = vld [vmem:[%s788 + $0x4] sm:$0xf]
        %v791 = vld [vmem:[%s788 + $0x8] sm:$0xf]
        %v792 = vld [vmem:[%s788 + $0xc] sm:$0xf]
        %s793 = scalar_lea.vmem [#allocation2], 80
        %v794 = vld [vmem:[%s793] sm:$0xf]
        %v795 = vld [vmem:[%s793 + $0x4] sm:$0xf]
        %v796 = vld [vmem:[%s793 + $0x8] sm:$0xf]
        %v797 = vld [vmem:[%s793 + $0xc] sm:$0xf]
        %s798 = scalar_lea.vmem %s3, 2
        %v799 = vld [vmem:[%s798] sm:$0x1]
        %800 = vmatpush.bf16.msra.mxu0 0
        %801 = vmatpush.bf16.msra.mxu0 0
        %802 = vmatpush.bf16.msra.mxu0 0
        %803 = vmatpush.bf16.msra.mxu0 0
        %804 = vmatpush.bf16.msra.mxu0 %v787
        %805 = vmatpush.bf16.msra.mxu0 %v786
        %806 = vmatpush.bf16.msra.mxu0 %v785
        %807 = vmatpush.bf16.msra.mxu0 %v784
        %808 = vmatmul.bf16.gmra.mxu0 %v424
        %v809 = vpop.f32.mrf.mxu0
        %v810 = vadd.f32 0.0, %v809
        %v811 = vpop.f32.mrf.mxu0
        %v812 = vadd.f32 0.0, %v811
        %813 = vmatmul.bf16.gmra.mxu0 %v427
        %v814 = vpop.f32.mrf.mxu0
        %v815 = vadd.f32 0.0, %v814
        %v816 = vpop.f32.mrf.mxu0
        %v817 = vadd.f32 0.0, %v816
        %818 = vmatmul.bf16.gmra.mxu0 %v430
        %v819 = vpop.f32.mrf.mxu0
        %v820 = vadd.f32 0.0, %v819
        %v821 = vpop.f32.mrf.mxu0
        %v822 = vadd.f32 0.0, %v821
        %823 = vmatmul.bf16.gmra.mxu0 %v433
        %v824 = vpop.f32.mrf.mxu0
        %v825 = vadd.f32 0.0, %v824
        %v826 = vpop.f32.mrf.mxu0
        %v827 = vadd.f32 0.0, %v826
        %828 = vdwg.mxu0
        %v829 = vmul.f32 %v810, %v295
        %v830 = vmul.f32 %v812, %v310
        %v831 = vmul.f32 %v815, %v325
        %v832 = vmul.f32 %v817, %v340
        %v833 = vmul.f32 %v820, %v355
        %v834 = vmul.f32 %v822, %v370
        %v835 = vmul.f32 %v825, %v385
        %v836 = vmul.f32 %v827, %v400
        %v837 = vpack.c.bf16 %v830, %v829
        %v838 = vpack.c.bf16 %v832, %v831
        %v839 = vpack.c.bf16 %v834, %v833
        %v840 = vpack.c.bf16 %v836, %v835
        %v845 = vunpack.c.l.b16 %v794
        %v846 = vunpack.c.l.b16 %v795
        %v847 = vunpack.c.l.b16 %v796
        %v848 = vunpack.c.l.b16 %v797
        %v849 = vpack.c.b16 %v846, %v845
        %v850 = vpack.c.b16 %v848, %v847
        %v854 = vsel %vm488, %v784, 0
        %v857 = vsel %vm488, %v785, 0
        %v860 = vsel %vm488, %v786, 0
        %v863 = vsel %vm488, %v787, 0
        %865 = vmatpush.bf16.msra.mxu0 0
        %866 = vmatpush.bf16.msra.mxu0 0
        %867 = vmatpush.bf16.msra.mxu0 0
        %868 = vmatpush.bf16.msra.mxu0 0
        %869 = vmatpush.bf16.msra.mxu0 0
        %870 = vmatpush.bf16.msra.mxu0 0
        %871 = vmatpush.bf16.msra.mxu0 %v850
        %872 = vmatpush.bf16.msra.mxu0 %v849
        %873 = vmatmul.bf16.gmra.mxu0 %v854
        %v874 = vpop.f32.mrf.mxu0
        %v875 = vadd.f32 0.0, %v874
        %v876 = vpop.f32.mrf.mxu0
        %v877 = vadd.f32 0.0, %v876
        %878 = vmatmul.bf16.gmra.mxu0 %v857
        %v879 = vpop.f32.mrf.mxu0
        %v880 = vadd.f32 0.0, %v879
        %v881 = vpop.f32.mrf.mxu0
        %v882 = vadd.f32 0.0, %v881
        %883 = vmatmul.bf16.gmra.mxu0 %v860
        %v884 = vpop.f32.mrf.mxu0
        %v885 = vadd.f32 0.0, %v884
        %v886 = vpop.f32.mrf.mxu0
        %v887 = vadd.f32 0.0, %v886
        %888 = vmatmul.bf16.gmra.mxu0 %v863
        %v889 = vpop.f32.mrf.mxu0
        %v890 = vadd.f32 0.0, %v889
        %v891 = vpop.f32.mrf.mxu0
        %v892 = vadd.f32 0.0, %v891
        %893 = vdwg.mxu0
        %v898 = vunpack.c.l.b16 %v789
        %v899 = vunpack.c.l.b16 %v790
        %v900 = vunpack.c.l.b16 %v791
        %v901 = vunpack.c.l.b16 %v792
        %v902 = vpack.c.b16 %v899, %v898
        %v903 = vpack.c.b16 %v901, %v900
        %v907 = vsel %vm488, %v837, 0
        %v910 = vsel %vm488, %v838, 0
        %v913 = vsel %vm488, %v839, 0
        %v916 = vsel %vm488, %v840, 0
        %918 = vmatpush.bf16.msra.mxu0 0
        %919 = vmatpush.bf16.msra.mxu0 0
        %920 = vmatpush.bf16.msra.mxu0 0
        %921 = vmatpush.bf16.msra.mxu0 0
        %922 = vmatpush.bf16.msra.mxu0 0
        %923 = vmatpush.bf16.msra.mxu0 0
        %924 = vmatpush.bf16.msra.mxu0 %v903
        %925 = vmatpush.bf16.msra.mxu0 %v902
        %926 = vmatmul.bf16.gmra.mxu0 %v907
        %v927 = vpop.f32.mrf.mxu0
        %v928 = vadd.f32 %v875, %v927
        %v929 = vpop.f32.mrf.mxu0
        %v930 = vadd.f32 %v877, %v929
        %931 = vmatmul.bf16.gmra.mxu0 %v910
        %v932 = vpop.f32.mrf.mxu0
        %v933 = vadd.f32 %v880, %v932
        %v934 = vpop.f32.mrf.mxu0
        %v935 = vadd.f32 %v882, %v934
        %936 = vmatmul.bf16.gmra.mxu0 %v913
        %v937 = vpop.f32.mrf.mxu0
        %v938 = vadd.f32 %v885, %v937
        %v939 = vpop.f32.mrf.mxu0
        %v940 = vadd.f32 %v887, %v939
        %941 = vmatmul.bf16.gmra.mxu0 %v916
        %v942 = vpop.f32.mrf.mxu0
        %v943 = vadd.f32 %v890, %v942
        %v944 = vpop.f32.mrf.mxu0
        %v945 = vadd.f32 %v892, %v944
        %946 = vdwg.mxu0
        %v948 = vperm.slane %v799, 0
        %v950 = vadd.f32 %v928, %v948
        %v951 = vadd.f32 %v930, %v948
        %v952 = vadd.f32 %v933, %v948
        %v953 = vadd.f32 %v935, %v948
        %v954 = vadd.f32 %v938, %v948
        %v955 = vadd.f32 %v940, %v948
        %v956 = vadd.f32 %v943, %v948
        %v957 = vadd.f32 %v945, %v948
        %vm958 = vcmask 130048
        %v959 = vsel %vm958, %v950, -inf
        %960 = vmax.xlane.f32.xlu0 %v959
        %v961 = vpop.xlane.xlu0 %960
        %v962 = vsel %vm958, %v951, -inf
        %963 = vmax.xlane.f32.xlu0 %v962
        %v964 = vpop.xlane.xlu0 %963
        %v965 = vsel %vm958, %v952, -inf
        %966 = vmax.xlane.f32.xlu0 %v965
        %v967 = vpop.xlane.xlu0 %966
        %v968 = vsel %vm958, %v953, -inf
        %969 = vmax.xlane.f32.xlu0 %v968
        %v970 = vpop.xlane.xlu0 %969
        %v971 = vsel %vm958, %v954, -inf
        %972 = vmax.xlane.f32.xlu0 %v971
        %v973 = vpop.xlane.xlu0 %972
        %v974 = vsel %vm958, %v955, -inf
        %975 = vmax.xlane.f32.xlu0 %v974
        %v976 = vpop.xlane.xlu0 %975
        %v977 = vsel %vm958, %v956, -inf
        %978 = vmax.xlane.f32.xlu0 %v977
        %v979 = vpop.xlane.xlu0 %978
        %v980 = vsel %vm958, %v957, -inf
        %981 = vmax.xlane.f32.xlu0 %v980
        %v982 = vpop.xlane.xlu0 %981
        %v983 = vsub.f32 %v950, %v961
        %v984 = vsub.f32 %v951, %v964
        %v985 = vsub.f32 %v952, %v967
        %v986 = vsub.f32 %v953, %v970
        %v987 = vsub.f32 %v954, %v973
        %v988 = vsub.f32 %v955, %v976
        %v989 = vsub.f32 %v956, %v979
        %v990 = vsub.f32 %v957, %v982
        %v991 = vmul.f32 %v983, 1.442695
        %v992 = vpow.pop %v991
        %v993 = vmul.f32 %v984, 1.442695
        %v994 = vpow.pop %v993
        %v995 = vmul.f32 %v985, 1.442695
        %v996 = vpow.pop %v995
        %v997 = vmul.f32 %v986, 1.442695
        %v998 = vpow.pop %v997
        %v999 = vmul.f32 %v987, 1.442695
        %v1000 = vpow.pop %v999
        %v1001 = vmul.f32 %v988, 1.442695
        %v1002 = vpow.pop %v1001
        %v1003 = vmul.f32 %v989, 1.442695
        %v1004 = vpow.pop %v1003
        %v1005 = vmul.f32 %v990, 1.442695
        %v1006 = vpow.pop %v1005
        %v1007 = vsel %vm958, %v992, 0.0
        %1008 = vadd.xlane.f32.xlu0 %v1007
        %v1009 = vpop.xlane.xlu0 %1008
        %v1010 = vsel %vm958, %v994, 0.0
        %1011 = vadd.xlane.f32.xlu0 %v1010
        %v1012 = vpop.xlane.xlu0 %1011
        %v1013 = vsel %vm958, %v996, 0.0
        %1014 = vadd.xlane.f32.xlu0 %v1013
        %v1015 = vpop.xlane.xlu0 %1014
        %v1016 = vsel %vm958, %v998, 0.0
        %1017 = vadd.xlane.f32.xlu0 %v1016
        %v1018 = vpop.xlane.xlu0 %1017
        %v1019 = vsel %vm958, %v1000, 0.0
        %1020 = vadd.xlane.f32.xlu0 %v1019
        %v1021 = vpop.xlane.xlu0 %1020
        %v1022 = vsel %vm958, %v1002, 0.0
        %1023 = vadd.xlane.f32.xlu0 %v1022
        %v1024 = vpop.xlane.xlu0 %1023
        %v1025 = vsel %vm958, %v1004, 0.0
        %1026 = vadd.xlane.f32.xlu0 %v1025
        %v1027 = vpop.xlane.xlu0 %1026
        %v1028 = vsel %vm958, %v1006, 0.0
        %1029 = vadd.xlane.f32.xlu0 %v1028
        %v1030 = vpop.xlane.xlu0 %1029
        %v1031 = vlog2.pop %v1009
        %v1032 = vmul.f32 %v1031, 0.6931472
        %v1033 = vlog2.pop %v1012
        %v1034 = vmul.f32 %v1033, 0.6931472
        %v1035 = vlog2.pop %v1015
        %v1036 = vmul.f32 %v1035, 0.6931472
        %v1037 = vlog2.pop %v1018
        %v1038 = vmul.f32 %v1037, 0.6931472
        %v1039 = vlog2.pop %v1021
        %v1040 = vmul.f32 %v1039, 0.6931472
        %v1041 = vlog2.pop %v1024
        %v1042 = vmul.f32 %v1041, 0.6931472
        %v1043 = vlog2.pop %v1027
        %v1044 = vmul.f32 %v1043, 0.6931472
        %v1045 = vlog2.pop %v1030
        %v1046 = vmul.f32 %v1045, 0.6931472
        %v1047 = vsub.f32 %v983, %v1032
        %v1048 = vsub.f32 %v984, %v1034
        %v1049 = vsub.f32 %v985, %v1036
        %v1050 = vsub.f32 %v986, %v1038
        %v1051 = vsub.f32 %v987, %v1040
        %v1052 = vsub.f32 %v988, %v1042
        %v1053 = vsub.f32 %v989, %v1044
        %v1054 = vsub.f32 %v990, %v1046
        %1055 = vst.msk [vmem:[%s234] sm:$0xff] %vm958, %v1047
        %1056 = vst.msk [vmem:[%s234 + $0x8] sm:$0xff] %vm958, %v1048
        %1057 = vst.msk [vmem:[%s234 + $0x10] sm:$0xff] %vm958, %v1049
        %1058 = vst.msk [vmem:[%s234 + $0x18] sm:$0xff] %vm958, %v1050
        %1059 = vst.msk [vmem:[%s234 + $0x20] sm:$0xff] %vm958, %v1051
        %1060 = vst.msk [vmem:[%s234 + $0x28] sm:$0xff] %vm958, %v1052
        %1061 = vst.msk [vmem:[%s234 + $0x30] sm:$0xff] %vm958, %v1053
        %1062 = vst.msk [vmem:[%s234 + $0x38] sm:$0xff] %vm958, %v1054
        %p1063 = scmp.lt.s32.totalorder %s16, 1
        %s1064 = scalar_select %p1063, %s16, 1
        %s1065 = smul.addr %s1064, 8
        %s1066 = smul.addr %s1065, 8
        %s1067 = scalar_lea.vmem %s4, %s1066
        // Predicated region
        $region41: #{tpu_custom_call.1} parent=35 // pred_check
          %p1068 = pneg %p128
        $region42: #{tpu_custom_call.1} parent=35 // pred_check_branch
          %1070 = sbr.rel (%p1068) target = $region44
        $region43: #{tpu_custom_call.1} parent=35 // pred_region
          _
        $region44: #{tpu_custom_call.1} parent=35 // pred_fallthru
          _
      $region36: #{tpu_custom_call.1} parent=5 // pred_fallthru
        _
      %p1071 = scmp.le.s32.totalorder 2, %s11
      // Predicated region
      $region45: #{tpu_custom_call.1} parent=5 // pred_check
        %p1072 = pneg %p1071
      $region46: #{tpu_custom_call.1} parent=5 // pred_check_branch
        %1074 = sbr.rel (%p1072) target = $region48
      $region47: #{tpu_custom_call.1} parent=5 // pred_region
        %s1075 = ssub.s32 %s11, 2
        // Predicated region
        $region49: #{tpu_custom_call.1} parent=47 // pred_check
          %p1076 = pneg %p134
        $region50: #{tpu_custom_call.1} parent=47 // pred_check_branch
          %1078 = sbr.rel (%p1076) target = $region52
        $region51: #{tpu_custom_call.1} parent=47 // pred_region
          %p1079 = scmp.lt.s32.totalorder %s17, 1
          %s1080 = scalar_select %p1079, %s17, 1
          %s1081 = smul.addr %s1080, 8
          %s1082 = smul.addr %s1081, 8
          %s1083 = scalar_lea.vmem %s4, %s1082
        $region52: #{tpu_custom_call.1} parent=47 // pred_fallthru
          _
      $region48: #{tpu_custom_call.1} parent=5 // pred_fallthru
        _
    $region6: #{tpu_custom_call.1} parent=1 // loop_footer
      %s15 = sadd.s32 1, %s11
    $region7: #{tpu_custom_call.1} parent=1 // loop_footer_branch
      %10 = sbr.rel target = $region3
    $region8: #{tpu_custom_call.1} parent=1 // loop_exit
      _
    %1084 = vsyncpa [#allocation3], 1
    %s1085 = scalar_lea.sflag [#allocation3], 1
    %1086 = vsyncpa %s1085, 1

</llo_original>
